<compile_context>
chip_gen: v6e
topology: v6e:2x2x1
jax: 0.10.0
libtpu: 0.0.40
codegen_flags: <defaults>
</compile_context>

<pallas_src>
import functools

import jax
import jax.numpy as jnp
from jax.experimental import pallas as pl
from jax.experimental.pallas import tpu as pltpu


def _hybrid_sums_kernel(y_ref, gt_ref, out_ref, acc_ref, carry_ref, *,
                        tile_c, n_ctiles, spatial_tv, spectral_tv):
    """One grid step = one batch element x one channel tile.

    y_ref, gt_ref : (1, tile_c, H, W) blocks (native dtype, cast to f32 here)
    out_ref       : (1, 4, 128) per-batch partial sums (value lives in lane 0):
                    [0]=sum|y-gt|, [1]=h_tv, [2]=w_tv, [3]=c_tv
    acc_ref       : SMEM (4,) f32 running sums for the current batch element
    carry_ref     : VMEM (H, W) f32 — last channel plane of the previous tile
    """
    ci = pl.program_id(1)

    y = y_ref[0].astype(jnp.float32)      # (tile_c, H, W)
    gt = gt_ref[0].astype(jnp.float32)

    @pl.when(ci == 0)
    def _init():
        for k in range(4):
            acc_ref[k] = jnp.float32(0.0)

    # [0] L1 fidelity numerator.
    acc_ref[0] = acc_ref[0] + jnp.sum(jnp.abs(y - gt))

    if spatial_tv:
        # Height / width diffs never cross a tile edge (full H, W per tile).
        dh = y[:, 1:, :] - y[:, :-1, :]
        acc_ref[1] = acc_ref[1] + jnp.sum(dh * dh)
        dw = y[:, :, 1:] - y[:, :, :-1]
        acc_ref[2] = acc_ref[2] + jnp.sum(dw * dw)

    if spectral_tv:
        if tile_c > 1:
            # In-tile channel diffs (leading-axis slices: plain plane selection).
            dc = y[1:] - y[:-1]
            acc_ref[3] = acc_ref[3] + jnp.sum(dc * dc)
        if n_ctiles > 1:
            # Cross-tile channel boundary via the carried previous plane.
            @pl.when(ci > 0)
            def _channel_boundary():
                bd = y[0] - carry_ref[...]
                acc_ref[3] = acc_ref[3] + jnp.sum(bd * bd)
            carry_ref[...] = y[tile_c - 1]

    @pl.when(ci == n_ctiles - 1)
    def _finalize():
        # Lane-dense (4,128) store; wrapper reads lane 0 of each row.
        row = jax.lax.broadcasted_iota(jnp.int32, (4, 128), 0)
        vals = jnp.where(row == 0, acc_ref[0], jnp.float32(0.0))
        if spatial_tv:
            vals = jnp.where(row == 1, acc_ref[1], vals)
            vals = jnp.where(row == 2, acc_ref[2], vals)
        if spectral_tv:
            vals = jnp.where(row == 3, acc_ref[3], vals)
        out_ref[0] = vals


def _pick_channel_tile(C, H, W, itemsize, budget_bytes):
    """Largest divisor of C whose (tc, H, W) block fits the per-input budget."""
    tc = 1
    for cand in range(1, C + 1):
        if C % cand == 0 and cand * H * W * itemsize <= budget_bytes:
            tc = cand
    return tc


def hybrid_loss(y, gt, lamd=0.1, spatial_tv=False, spectral_tv=False,
                spatial_weight=0.001, spectral_weight=0.001,
                channel_tile=None, tile_budget_bytes=1 << 20):
    """JAX/Pallas equivalent of HybridLoss(spatial_tv, spectral_tv).forward(y, gt).

    `lamd` is stored-but-unused in the reference module's forward; kept for parity.
    """
    assert y.shape == gt.shape and y.ndim == 4
    B, C, H, W = y.shape
    itemsize = jnp.dtype(y.dtype).itemsize
    if channel_tile is None:
        channel_tile = _pick_channel_tile(C, H, W, itemsize, tile_budget_bytes)
    assert C % channel_tile == 0
    n_ctiles = C // channel_tile

    kernel = functools.partial(
        _hybrid_sums_kernel,
        tile_c=channel_tile, n_ctiles=n_ctiles,
        spatial_tv=spatial_tv, spectral_tv=spectral_tv)

    block = (1, channel_tile, H, W)

    partials = pl.pallas_call(
        kernel,
        out_shape=jax.ShapeDtypeStruct((B, 4, 128), jnp.float32),
        grid=(B, n_ctiles),
        in_specs=[
            pl.BlockSpec(block, lambda b, ci: (b, ci, 0, 0)),
            pl.BlockSpec(block, lambda b, ci: (b, ci, 0, 0)),
        ],
        out_specs=pl.BlockSpec((1, 4, 128), lambda b, ci: (b, 0, 0)),
        scratch_shapes=[
            pltpu.SMEM((4,), jnp.float32),      # running sums (per batch element)
            pltpu.VMEM((H, W), jnp.float32),    # carried last channel plane
        ],
        compiler_params=pltpu.CompilerParams(
            dimension_semantics=("parallel", "arbitrary"),
            vmem_limit_bytes=32 * 1024 * 1024),
    )(y, gt)

    sums = jnp.sum(partials[:, :, 0], axis=0)   # (4,) global raw sums

    # L1Loss default reduction is 'mean'.
    total = sums[0] / (B * C * H * W)
    if spatial_tv:
        count_h = C * (H - 1) * W
        count_w = C * H * (W - 1)
        total = total + spatial_weight * (sums[1] / count_h + sums[2] / count_w) / B
    if spectral_tv:
        count_c = (C - 1) * H * W
        total = total + spectral_weight * 2.0 * (sums[3] / count_c) / B
    return total


def _hybrid_loss_ref(y, gt, spatial_tv=False, spectral_tv=False,
                     spatial_weight=0.001, spectral_weight=0.001):
    """Pure-JAX reference for correctness checking (f32 upcast like the kernel)."""
    y = y.astype(jnp.float32)
    gt = gt.astype(jnp.float32)
    B, C, H, W = y.shape
    total = jnp.mean(jnp.abs(y - gt))
    if spatial_tv:
        h_tv = jnp.sum((y[:, :, 1:, :] - y[:, :, :-1, :]) ** 2)
        w_tv = jnp.sum((y[:, :, :, 1:] - y[:, :, :, :-1]) ** 2)
        count_h = C * (H - 1) * W
        count_w = C * H * (W - 1)
        total = total + spatial_weight * (h_tv / count_h + w_tv / count_w) / B
    if spectral_tv:
        c_tv = jnp.sum((y[:, 1:, :, :] - y[:, :-1, :, :]) ** 2)
        count_c = (C - 1) * H * W
        total = total + spectral_weight * 2.0 * (c_tv / count_c) / B
    return total


if __name__ == "__main__":
    B, C, H, W = 2, 4, 16, 16
    key = jax.random.PRNGKey(0)
    ky, kg = jax.random.split(key)
    y = jax.random.normal(ky, (B, C, H, W), dtype=jnp.float32)
    gt = jax.random.normal(kg, (B, C, H, W), dtype=jnp.float32)

    # Default config: pure L1 (kernel variant skips all TV work).
    loss_default = hybrid_loss(y, gt)
    jax.block_until_ready(loss_default)

    # Full config: both TV terms, auto channel tile (whole channel stack per step).
    loss_full = hybrid_loss(y, gt, spatial_tv=True, spectral_tv=True)
    jax.block_until_ready(loss_full)

    # Force channel_tile=1 to exercise multi-tile accumulation + channel carry.
    loss_tiled = hybrid_loss(y, gt, spatial_tv=True, spectral_tv=True,
                             channel_tile=1)
    jax.block_until_ready(loss_tiled)

    # bf16 inputs: the f32 upcast happens inside the kernel per tile.
    y16 = y.astype(jnp.bfloat16)
    gt16 = gt.astype(jnp.bfloat16)
    loss_bf16 = hybrid_loss(y16, gt16, spatial_tv=True, spectral_tv=True)
    jax.block_until_ready(loss_bf16)

    ref_default = _hybrid_loss_ref(y, gt)
    ref_full = _hybrid_loss_ref(y, gt, spatial_tv=True, spectral_tv=True)
    ref_bf16 = _hybrid_loss_ref(y16, gt16, spatial_tv=True, spectral_tv=True)

    assert jnp.allclose(loss_default, ref_default, rtol=1e-5, atol=1e-6), (
        loss_default, ref_default)
    assert jnp.allclose(loss_full, ref_full, rtol=1e-5, atol=1e-6), (
        loss_full, ref_full)
    assert jnp.allclose(loss_tiled, ref_full, rtol=1e-5, atol=1e-6), (
        loss_tiled, ref_full)
    assert jnp.allclose(loss_bf16, ref_bf16, rtol=1e-4, atol=1e-5), (
        loss_bf16, ref_bf16)

    print("KERNEL_OK")
</pallas_src>

<mosaic_0001>
module attributes {stable_mosaic.version = 11 : i64} {
  func.func @_hybrid_sums_kernel(%arg0: i32, %arg1: i32, %arg2: memref<1x4x16x16xf32, #tpu.memory_space<vmem>>, %arg3: memref<1x4x16x16xf32, #tpu.memory_space<vmem>>, %arg4: memref<1x4x128xf32, #tpu.memory_space<vmem>>, %arg5: memref<4xf32, #tpu.memory_space<smem>>, %arg6: memref<16x16xf32, #tpu.memory_space<vmem>>) attributes {dimension_semantics = [#tpu.dimension_semantics<parallel>, #tpu.dimension_semantics<arbitrary>], iteration_bounds = array<i64: 2, 1>, scalar_prefetch = 0 : i64, scratch_operands = 2 : i64, tpu.core_type = #tpu.core_type<tc>, window_params = [{transform_indices = @transform_0, window_bounds = array<i64: 1, 4, 16, 16>}, {transform_indices = @transform_1, window_bounds = array<i64: 1, 4, 16, 16>}, {transform_indices = @transform_2, window_bounds = array<i64: 1, 4, 128>}]} {
    %c0 = arith.constant 0 : index
    %c0_0 = arith.constant 0 : index
    %c0_1 = arith.constant 0 : index
    %c0_2 = arith.constant 0 : index
    %0 = vector.load %arg2[%c0, %c0_0, %c0_1, %c0_2] : memref<1x4x16x16xf32, #tpu.memory_space<vmem>>, vector<1x4x16x16xf32>
    %1 = vector.shape_cast %0 : vector<1x4x16x16xf32> to vector<4x16x16xf32>
    %c0_3 = arith.constant 0 : index
    %c0_4 = arith.constant 0 : index
    %c0_5 = arith.constant 0 : index
    %c0_6 = arith.constant 0 : index
    %2 = vector.load %arg3[%c0_3, %c0_4, %c0_5, %c0_6] : memref<1x4x16x16xf32, #tpu.memory_space<vmem>>, vector<1x4x16x16xf32>
    %3 = vector.shape_cast %2 : vector<1x4x16x16xf32> to vector<4x16x16xf32>
    %c0_i32 = arith.constant 0 : i32
    %4 = arith.cmpi eq, %arg1, %c0_i32 : i32
    %5 = arith.extui %4 : i1 to i32
    %c0_i32_7 = arith.constant 0 : i32
    %6 = arith.cmpi ne, %5, %c0_i32_7 : i32
    scf.if %6 {
      %cst_12 = arith.constant 0.000000e+00 : f32
      %c0_13 = arith.constant 0 : index
      %19 = memref.load %arg5[%c0_13] : memref<4xf32, #tpu.memory_space<smem>>
      memref.store %cst_12, %arg5[%c0_13] : memref<4xf32, #tpu.memory_space<smem>>
      %cst_14 = arith.constant 0.000000e+00 : f32
      %c1 = arith.constant 1 : index
      %20 = memref.load %arg5[%c1] : memref<4xf32, #tpu.memory_space<smem>>
      memref.store %cst_14, %arg5[%c1] : memref<4xf32, #tpu.memory_space<smem>>
      %cst_15 = arith.constant 0.000000e+00 : f32
      %c2 = arith.constant 2 : index
      %21 = memref.load %arg5[%c2] : memref<4xf32, #tpu.memory_space<smem>>
      memref.store %cst_15, %arg5[%c2] : memref<4xf32, #tpu.memory_space<smem>>
      %cst_16 = arith.constant 0.000000e+00 : f32
      %c3 = arith.constant 3 : index
      %22 = memref.load %arg5[%c3] : memref<4xf32, #tpu.memory_space<smem>>
      memref.store %cst_16, %arg5[%c3] : memref<4xf32, #tpu.memory_space<smem>>
    } else {
    }
    %c0_8 = arith.constant 0 : index
    %7 = memref.load %arg5[%c0_8] : memref<4xf32, #tpu.memory_space<smem>>
    %8 = arith.subf %1, %3 : vector<4x16x16xf32>
    %9 = math.absf %8 : vector<4x16x16xf32>
    %10 = vector.shape_cast %9 : vector<4x16x16xf32> to vector<1x4x16x16xf32>
    %cst = arith.constant dense<0.000000e+00> : vector<1xf32>
    %11 = vector.multi_reduction <add>, %10, %cst [1, 2, 3] : vector<1x4x16x16xf32> to vector<1xf32>
    %12 = vector.shape_cast %11 : vector<1xf32> to vector<1x1x1x1xf32>
    %13 = vector.extract %12[0, 0, 0, 0] : f32 from vector<1x1x1x1xf32>
    %14 = arith.addf %7, %13 : f32
    %c0_9 = arith.constant 0 : index
    %15 = memref.load %arg5[%c0_9] : memref<4xf32, #tpu.memory_space<smem>>
    memref.store %14, %arg5[%c0_9] : memref<4xf32, #tpu.memory_space<smem>>
    %c0_i32_10 = arith.constant 0 : i32
    %16 = arith.cmpi eq, %arg1, %c0_i32_10 : i32
    %17 = arith.extui %16 : i1 to i32
    %c0_i32_11 = arith.constant 0 : i32
    %18 = arith.cmpi ne, %17, %c0_i32_11 : i32
    scf.if %18 {
      %19 = tpu.iota {dimensions = array<i32: 0>} : vector<4x128xi32>
      %c0_i32_12 = arith.constant 0 : i32
      %20 = vector.broadcast %c0_i32_12 : i32 to vector<4x128xi32>
      %21 = arith.cmpi eq, %19, %20 : vector<4x128xi32>
      %c0_13 = arith.constant 0 : index
      %22 = memref.load %arg5[%c0_13] : memref<4xf32, #tpu.memory_space<smem>>
      %cst_14 = arith.constant 0.000000e+00 : f32
      %23 = vector.broadcast %22 : f32 to vector<4x128xf32>
      %24 = vector.broadcast %cst_14 : f32 to vector<4x128xf32>
      %25 = arith.select %21, %23, %24 : vector<4x128xi1>, vector<4x128xf32>
      %c0_15 = arith.constant 0 : index
      %c0_16 = arith.constant 0 : index
      %c0_17 = arith.constant 0 : index
      %26 = vector.load %arg4[%c0_15, %c0_16, %c0_17] : memref<1x4x128xf32, #tpu.memory_space<vmem>>, vector<1x4x128xf32>
      %27 = vector.shape_cast %26 : vector<1x4x128xf32> to vector<4x128xf32>
      %28 = vector.shape_cast %25 : vector<4x128xf32> to vector<1x4x128xf32>
      tpu.vector_store %arg4[%c0_15, %c0_16, %c0_17], %28 {strides = array<i32>} : memref<1x4x128xf32, #tpu.memory_space<vmem>>, vector<1x4x128xf32>,
    } else {
    }
    return
  }
  func.func @transform_0(%arg0: i32, %arg1: i32) -> (i32, i32, i32, i32) {
    %c0_i32 = arith.constant 0 : i32
    %c0_i32_0 = arith.constant 0 : i32
    %c0_i32_1 = arith.constant 0 : i32
    return %arg0, %arg1, %c0_i32, %c0_i32_0 : i32, i32, i32, i32
  }
  func.func @transform_1(%arg0: i32, %arg1: i32) -> (i32, i32, i32, i32) {
    %c0_i32 = arith.constant 0 : i32
    %c0_i32_0 = arith.constant 0 : i32
    %c0_i32_1 = arith.constant 0 : i32
    return %arg0, %arg1, %c0_i32, %c0_i32_0 : i32, i32, i32, i32
  }
  func.func @transform_2(%arg0: i32, %arg1: i32) -> (i32, i32, i32) {
    %c0_i32 = arith.constant 0 : i32
    %c0_i32_0 = arith.constant 0 : i32
    %c0_i32_1 = arith.constant 0 : i32
    return %arg0, %c0_i32, %c0_i32_0 : i32, i32, i32
  }
}

</mosaic_0001>

<llo_original>
// kernel: tpu_custom_call.1
$region0: #{tpu_custom_call.1}
  #allocation0 [shape = 'u32[]', space=smem, size = 0x4, offset = 0x4, fixed_abs, tag = 'smem constant byte address 0x4 - core index']
  #allocation1 [shape = 'u32[144,128]{1,0:T(1,128)}', space=vmem, size = 0x12000, scoped, tag = 'internal scratch']
  #allocation2 [shape = 'f32[4]{0:T(128)}', space=smem, size = 0x200, scoped, tag = 'scratch operand']
  #allocation3 [shape = 'f32[16,16]{1,0:T(8,128)}', space=vmem, size = 0x2000, scoped, tag = 'scratch operand']
  %s0 = inlined_call_operand.hbm [shape: f32[2,4,16,16], index: 0, kind: input, shape index: {}]
  %s1 = inlined_call_operand.hbm [shape: f32[2,4,16,16], index: 1, kind: input, shape index: {}]
  %s2 = inlined_call_operand.hbm [shape: f32[2,4,128], index: 2, kind: output, shape index: {}]
  %s3 = sld [smem:[#allocation0]]
  $region57: #{tpu_custom_call.1} parent=0
    _
  %s5 = ssub.s32 1, %s3
  %s6 = scalar_select 0, %s5, %s3
  $region1: #{tpu_custom_call.1} parent=0
    #allocation4 [shape = 'u8[65536]{0}', space=vmem, size = 0x10000, scoped, tag = 'input window, operand 0']
    #allocation5 [shape = 's32[2]{0}', space=sflag, size = 0x8, scoped, tag = 'scoped memory for tpu_custom_call.1']
    #allocation6 [shape = 's32[2]{0}', space=sflag, size = 0x8, scoped, tag = 'scoped memory for tpu_custom_call.1']
    #allocation7 [shape = 'u8[65536]{0}', space=vmem, size = 0x10000, scoped, tag = 'input window, operand 1']
    #allocation8 [shape = 's32[2]{0}', space=sflag, size = 0x8, scoped, tag = 'scoped memory for tpu_custom_call.1']
    #allocation9 [shape = 'u8[4096]{0}', space=vmem, size = 0x1000, scoped, tag = 'output window, operand 0']
    %7 = vsyncpa [#allocation5], 0
    %s8 = scalar_lea.sflag [#allocation5], 1
    %9 = vsyncpa %s8, 0
    %10 = vsyncpa [#allocation8], 0
    %s11 = scalar_lea.sflag [#allocation8], 1
    %12 = vsyncpa %s11, 0
    %13 = vsyncpa [#allocation6], 0
    %s14 = scalar_lea.sflag [#allocation6], 1
    %15 = vsyncpa %s14, 0
    loop: start=0, step=1, limit=4
    $region2: #{tpu_custom_call.1} parent=1 // loop_pre_header
      _
    $region3: #{tpu_custom_call.1} parent=1 // loop_header
      %s17 = sphi 0, %s21
      %p18 = scmp.ge.s32.totalorder %s17, 4
      %s24 = sphi 0, %s36
      %s25 = sphi 0, %s32
      %s26 = sphi 0, %s24
      %s27 = sphi 0, %s25
      %s28 = sphi 0, %s26
      %s29 = sphi 0, %s27
      %s41 = sphi 0, %s43
      %s44 = sphi 0, %s41
      %s45 = sphi 0, %s44
      %s61 = sphi 0, %s45
      %s69 = sphi 0, %s71
      %s72 = sphi 0, %s69
      %s73 = sphi 0, %s72
      %s89 = sphi 0, %s73
      %s95 = sphi 0, %s97
      %s98 = sphi 0, %s95
      %s99 = sphi 0, %s98
      %s115 = sphi 0, %s99
    $region4: #{tpu_custom_call.1} parent=1 // loop_header_branch
      %20 = sbr.rel (%p18) target = $region8
    $region5: #{tpu_custom_call.1} parent=1 // loop_body
      %s22 = ssub.s32 %s17, 1
      %s23 = ssub.s32 %s17, 2
      %s30 = sadd.s32 1, %s25
      %p31 = scmp.ge.s32.totalorder %s30, 1
      %s32 = scalar_select %p31, 0, %s30
      %s33 = sadd.s32 1, %s24
      %s34 = scalar_select %p31, %s33, %s24
      %p35 = scmp.ge.s32.totalorder %s34, 2
      %s36 = scalar_select %p35, 0, %s34
      %s37 = ssub.s32 %s24, %s36
      %s38 = ssub.s32 %s25, %s32
      %s39 = sor.u32 %s37, %s38
      %p40 = scmp.eq.s32.totalorder %s39, 0
      %s42 = sadd.s32 %s41, 1
      %s43 = scalar_select %p40, %s41, %s42
      %p46 = pneg %p40
      %p47 = scmp.eq.s32.totalorder %s17, 1
      %p48 = por %p46, %p47
      %p49 = scmp.ne.s32.totalorder %s41, %s44
      %p50 = scmp.eq.s32.totalorder %s17, 0
      %p51 = por %p49, %p50
      %p52 = scmp.ne.s32.totalorder %s41, %s44
      %p53 = scmp.eq.s32.totalorder %s22, 1
      %p54 = por %p52, %p53
      %p55 = scmp.ne.s32.totalorder %s44, %s45
      %p56 = scmp.eq.s32.totalorder %s22, 0
      %p57 = por %p55, %p56
      %p58 = scmp.ne.s32.totalorder %s44, %s45
      %p59 = scmp.eq.s32.totalorder %s23, 1
      %p60 = por %p58, %p59
      %p62 = scmp.ne.s32.totalorder %s45, %s61
      %p63 = scmp.eq.s32.totalorder %s23, 0
      %p64 = por %p62, %p63
      %s65 = ssub.s32 %s24, %s36
      %s66 = ssub.s32 %s25, %s32
      %s67 = sor.u32 %s65, %s66
      %p68 = scmp.eq.s32.totalorder %s67, 0
      %s70 = sadd.s32 %s69, 1
      %s71 = scalar_select %p68, %s69, %s70
      %p74 = pneg %p68
      %p75 = scmp.eq.s32.totalorder %s17, 1
      %p76 = por %p74, %p75
      %p77 = scmp.ne.s32.totalorder %s69, %s72
      %p78 = scmp.eq.s32.totalorder %s17, 0
      %p79 = por %p77, %p78
      %p80 = scmp.ne.s32.totalorder %s69, %s72
      %p81 = scmp.eq.s32.totalorder %s22, 1
      %p82 = por %p80, %p81
      %p83 = scmp.ne.s32.totalorder %s72, %s73
      %p84 = scmp.eq.s32.totalorder %s22, 0
      %p85 = por %p83, %p84
      %p86 = scmp.ne.s32.totalorder %s72, %s73
      %p87 = scmp.eq.s32.totalorder %s23, 1
      %p88 = por %p86, %p87
      %p90 = scmp.ne.s32.totalorder %s73, %s89
      %p91 = scmp.eq.s32.totalorder %s23, 0
      %p92 = por %p90, %p91
      %s93 = ssub.s32 %s24, %s36
      %p94 = scmp.eq.s32.totalorder %s93, 0
      %s96 = sadd.s32 %s95, 1
      %s97 = scalar_select %p94, %s95, %s96
      %p100 = pneg %p94
      %p101 = scmp.eq.s32.totalorder %s17, 1
      %p102 = por %p100, %p101
      %p103 = scmp.ne.s32.totalorder %s95, %s98
      %p104 = scmp.eq.s32.totalorder %s17, 0
      %p105 = por %p103, %p104
      %p106 = scmp.ne.s32.totalorder %s95, %s98
      %p107 = scmp.eq.s32.totalorder %s22, 1
      %p108 = por %p106, %p107
      %p109 = scmp.ne.s32.totalorder %s98, %s99
      %p110 = scmp.eq.s32.totalorder %s22, 0
      %p111 = por %p109, %p110
      %p112 = scmp.ne.s32.totalorder %s98, %s99
      %p113 = scmp.eq.s32.totalorder %s23, 1
      %p114 = por %p112, %p113
      %p116 = scmp.ne.s32.totalorder %s99, %s115
      %p117 = scmp.eq.s32.totalorder %s23, 0
      %p118 = por %p116, %p117
      %p119 = scmp.le.s32.totalorder 1, %s17
      %p120 = scmp.lt.s32.totalorder %s17, 3
      %p121 = pnand %p119, %p120
      %p122 = pneg %p121
      // Predicated region
      $region9: #{tpu_custom_call.1} parent=5 // pred_check
        _
      $region10: #{tpu_custom_call.1} parent=5 // pred_check_branch
        %124 = sbr.rel (%p121) target = $region12
      $region11: #{tpu_custom_call.1} parent=5 // pred_region
        %s125 = ssub.s32 %s17, 1
      $region12: #{tpu_custom_call.1} parent=5 // pred_fallthru
        _
      %p126 = scmp.lt.s32.totalorder %s17, 2
      // Predicated region
      $region13: #{tpu_custom_call.1} parent=5 // pred_check
        %p127 = pneg %p126
      $region14: #{tpu_custom_call.1} parent=5 // pred_check_branch
        %129 = sbr.rel (%p127) target = $region16
      $region15: #{tpu_custom_call.1} parent=5 // pred_region
        // Predicated region
        $region17: #{tpu_custom_call.1} parent=15 // pred_check
          %p130 = pneg %p51
        $region18: #{tpu_custom_call.1} parent=15 // pred_check_branch
          %132 = sbr.rel (%p130) target = $region20
        $region19: #{tpu_custom_call.1} parent=15 // pred_region
          %s133 = sand.u32 %s41, 1
          %s134 = scalar_lea.sflag [#allocation5], %s133
          %s135 = sand.u32 %s41, 1
          %s136 = smul.addr %s135, 64
          %s137 = scalar_lea.vmem [#allocation4], %s136
          %s138 = smul.u32 4, %s25
          %s140 = ssub.s32 1024, 1024
          %141 = vsyncadd %s134, %s140
          %s142 = smul.addr %s138, 2
          %s143 = smul.addr %s24, 8
          %s144 = sadd.s32 %s142, %s143
          %s145 = smul.addr %s144, 128
          %s146 = scalar_lea.hbm %s0, %s145
          %s147 = sshll.u32 %s137, 4
          %s148 = int_to_ptr.vmem [resolvable:$true] %s147
          %153 = dma.hbm_to_vmem [thread:$0]  %s146, 1024, %s148, %s134, 128, 128, 8
        $region20: #{tpu_custom_call.1} parent=15 // pred_fallthru
          _
        // Predicated region
        $region21: #{tpu_custom_call.1} parent=15 // pred_check
          %p154 = pneg %p79
        $region22: #{tpu_custom_call.1} parent=15 // pred_check_branch
          %156 = sbr.rel (%p154) target = $region24
        $region23: #{tpu_custom_call.1} parent=15 // pred_region
          %s157 = sand.u32 %s69, 1
          %s158 = scalar_lea.sflag [#allocation8], %s157
          %s159 = sand.u32 %s69, 1
          %s160 = smul.addr %s159, 64
          %s161 = scalar_lea.vmem [#allocation7], %s160
          %s162 = smul.u32 4, %s25
          %s164 = ssub.s32 1024, 1024
          %165 = vsyncadd %s158, %s164
          %s166 = smul.addr %s162, 2
          %s167 = smul.addr %s24, 8
          %s168 = sadd.s32 %s166, %s167
          %s169 = smul.addr %s168, 128
          %s170 = scalar_lea.hbm %s1, %s169
          %s171 = sshll.u32 %s161, 4
          %s172 = int_to_ptr.vmem [resolvable:$true] %s171
          %177 = dma.hbm_to_vmem [thread:$0]  %s170, 1024, %s172, %s158, 128, 128, 8
        $region24: #{tpu_custom_call.1} parent=15 // pred_fallthru
          _
      $region16: #{tpu_custom_call.1} parent=5 // pred_fallthru
        _
      %p178 = scmp.le.s32.totalorder 1, %s17
      %p179 = scmp.lt.s32.totalorder %s17, 3
      %p180 = pnand %p178, %p179
      %p181 = pneg %p180
      // Predicated region
      $region25: #{tpu_custom_call.1} parent=5 // pred_check
        _
      $region26: #{tpu_custom_call.1} parent=5 // pred_check_branch
        %183 = sbr.rel (%p180) target = $region28
      $region27: #{tpu_custom_call.1} parent=5 // pred_region
        %s184 = ssub.s32 %s17, 1
        %s185 = sand.u32 %s44, 1
        %s186 = scalar_lea.sflag [#allocation5], %s185
        %s187 = sand.u32 %s44, 1
        %s188 = smul.addr %s187, 64
        %s189 = scalar_lea.vmem [#allocation4], %s188
        // Predicated region
        $region29: #{tpu_custom_call.1} parent=27 // pred_check
          %p190 = pneg %p57
        $region30: #{tpu_custom_call.1} parent=27 // pred_check_branch
          %192 = sbr.rel (%p190) target = $region32
        $region31: #{tpu_custom_call.1} parent=27 // pred_region
          %193 = dma.done %s186, 1024
        $region32: #{tpu_custom_call.1} parent=27 // pred_fallthru
          _
        %s194 = sand.u32 %s72, 1
        %s195 = scalar_lea.sflag [#allocation8], %s194
        %s196 = sand.u32 %s72, 1
        %s197 = smul.addr %s196, 64
        %s198 = scalar_lea.vmem [#allocation7], %s197
        // Predicated region
        $region33: #{tpu_custom_call.1} parent=27 // pred_check
          %p199 = pneg %p85
        $region34: #{tpu_custom_call.1} parent=27 // pred_check_branch
          %201 = sbr.rel (%p199) target = $region36
        $region35: #{tpu_custom_call.1} parent=27 // pred_region
          %202 = dma.done %s195, 1024
        $region36: #{tpu_custom_call.1} parent=27 // pred_fallthru
          _
        %s203 = sand.u32 %s44, 1
        %s204 = scalar_lea.sflag [#allocation5], %s203
        %s205 = sand.u32 %s44, 1
        %s206 = smul.addr %s205, 64
        %s207 = scalar_lea.vmem [#allocation4], %s206
        %p208 = pneg %p57
        %p209 = pneg %p54
        %s210 = sand.u32 %s72, 1
        %s211 = scalar_lea.sflag [#allocation8], %s210
        %s212 = sand.u32 %s72, 1
        %s213 = smul.addr %s212, 64
        %s214 = scalar_lea.vmem [#allocation7], %s213
        %p215 = pneg %p85
        %p216 = pneg %p82
        %p217 = pneg %p111
        %p218 = pneg %p108
        %s219 = sand.u32 %s98, 1
        %s220 = scalar_lea.sflag [#allocation6], %s219
        %s221 = sand.u32 %s98, 1
        %s222 = smul.addr %s221, 4
        %s223 = scalar_lea.vmem [#allocation9], %s222
        %s224 = smul.u32 4, %s27
        %s225 = smul.u32 4, %s27
        %v226 = vld [vmem:[%s189] sm:$0xff]
        %v227 = vld [vmem:[%s189 + $0x8] sm:$0xff]
        %v228 = vld [vmem:[%s189 + $0x10] sm:$0xff]
        %v229 = vld [vmem:[%s189 + $0x18] sm:$0xff]
        %v230 = vld [vmem:[%s189 + $0x20] sm:$0xff]
        %v231 = vld [vmem:[%s189 + $0x28] sm:$0xff]
        %v232 = vld [vmem:[%s189 + $0x30] sm:$0xff]
        %v233 = vld [vmem:[%s189 + $0x38] sm:$0xff]
        %v234 = vld [vmem:[%s198] sm:$0xff]
        %v235 = vld [vmem:[%s198 + $0x8] sm:$0xff]
        %v236 = vld [vmem:[%s198 + $0x10] sm:$0xff]
        %v237 = vld [vmem:[%s198 + $0x18] sm:$0xff]
        %v238 = vld [vmem:[%s198 + $0x20] sm:$0xff]
        %v239 = vld [vmem:[%s198 + $0x28] sm:$0xff]
        %v240 = vld [vmem:[%s198 + $0x30] sm:$0xff]
        %v241 = vld [vmem:[%s198 + $0x38] sm:$0xff]
        %p242 = scmp.eq.s32.totalorder %s27, 0
        // Predicated region
        $region37: #{tpu_custom_call.1} parent=27 // pred_check
          %p243 = pneg %p242
        $region38: #{tpu_custom_call.1} parent=27 // pred_check_branch
          %245 = sbr.rel (%p243) target = $region40
        $region39: #{tpu_custom_call.1} parent=27 // pred_region
          %s246 = scalar_lea.smem [#allocation2], 0
          %247 = sst [smem:[%s246]] 0.0
          %s248 = scalar_lea.smem [#allocation2], 1
          %249 = sst [smem:[%s248]] 0.0
          %s250 = scalar_lea.smem [#allocation2], 2
          %251 = sst [smem:[%s250]] 0.0
          %s252 = scalar_lea.smem [#allocation2], 3
          %253 = sst [smem:[%s252]] 0.0
        $region40: #{tpu_custom_call.1} parent=27 // pred_fallthru
          _
        %s254 = sld [smem:[#allocation2]]
        %v255 = vsub.f32 %v226, %v234
        %v256 = vsub.f32 %v227, %v235
        %v257 = vsub.f32 %v228, %v236
        %v258 = vsub.f32 %v229, %v237
        %v259 = vsub.f32 %v230, %v238
        %v260 = vsub.f32 %v231, %v239
        %v261 = vsub.f32 %v232, %v240
        %v262 = vsub.f32 %v233, %v241
        %v263 = vand.u32 2147483647, %v255
        %v264 = vand.u32 2147483647, %v256
        %v265 = vand.u32 2147483647, %v257
        %v266 = vand.u32 2147483647, %v258
        %v267 = vand.u32 2147483647, %v259
        %v268 = vand.u32 2147483647, %v260
        %v269 = vand.u32 2147483647, %v261
        %v270 = vand.u32 2147483647, %v262
        %vm271 = vcmask 130048
        %v272 = vsel %vm271, %v263, 0.0
        %v273 = vsel %vm271, %v264, 0.0
        %v274 = vadd.f32 %v272, %v273
        %v275 = vsel %vm271, %v265, 0.0
        %v276 = vadd.f32 %v274, %v275
        %v277 = vsel %vm271, %v266, 0.0
        %v278 = vadd.f32 %v276, %v277
        %v279 = vsel %vm271, %v267, 0.0
        %v280 = vadd.f32 %v278, %v279
        %v281 = vsel %vm271, %v268, 0.0
        %v282 = vadd.f32 %v280, %v281
        %v283 = vsel %vm271, %v269, 0.0
        %v284 = vadd.f32 %v282, %v283
        %v285 = vsel %vm271, %v270, 0.0
        %v286 = vadd.f32 %v284, %v285
        %287 = vadd.xlane.f32.xlu0 %v286
        %v288 = vpop.xlane.xlu0 %287
        %v289 = vrot.slane %v288, 4
        %v290 = vadd.f32 %v288, %v289
        %v291 = vrot.slane %v290, 2
        %v292 = vadd.f32 %v290, %v291
        %v293 = vrot.slane %v292, 1
        %v294 = vadd.f32 %v292, %v293
        %s295 = vtos %v294
        %s296 = sadd.f32 %s254, %s295
        %s297 = scalar_lea.smem [#allocation2], 0
        %298 = sst [smem:[%s297]] %s296
        // Predicated region
        $region41: #{tpu_custom_call.1} parent=27 // pred_check
          %p299 = pneg %p242
        $region42: #{tpu_custom_call.1} parent=27 // pred_check_branch
          %301 = sbr.rel (%p299) target = $region44
        $region43: #{tpu_custom_call.1} parent=27 // pred_region
          %v302 = vlaneseq
          %v303 = vshrl.u32 %v302, 7
          %vm304 = vcmp.eq.s32.totalorder %v303, 0
          %s305 = sld [smem:[#allocation2]]
          %v306 = vstv %s305
          %v307 = vsel %vm304, %v306, 0.0
          %308 = vst [vmem:[%s223] sm:$0xf] %v307
        $region44: #{tpu_custom_call.1} parent=27 // pred_fallthru
          _
        %s309 = sand.u32 %s98, 1
        %s310 = scalar_lea.sflag [#allocation6], %s309
        %s311 = sand.u32 %s98, 1
        %s312 = smul.addr %s311, 4
        %s313 = scalar_lea.vmem [#allocation9], %s312
        // Predicated region
        $region45: #{tpu_custom_call.1} parent=27 // pred_check
          %p314 = pneg %p108
        $region46: #{tpu_custom_call.1} parent=27 // pred_check_branch
          %316 = sbr.rel (%p314) target = $region48
        $region47: #{tpu_custom_call.1} parent=27 // pred_region
          %s318 = ssub.s32 64, 64
          %319 = vsyncadd %s310, %s318
          %s320 = smul.addr %s26, 64
          %s321 = scalar_lea.hbm %s2, %s320
          %s323 = sshll.u32 %s313, 4
          %s324 = int_to_ptr.vmem [resolvable:$true] %s323
          %326 = dma.vmem_to_hbm [thread:$0]  %s324, 64, %s321, %s310
        $region48: #{tpu_custom_call.1} parent=27 // pred_fallthru
          _
      $region28: #{tpu_custom_call.1} parent=5 // pred_fallthru
        _
      %p327 = scmp.le.s32.totalorder 2, %s17
      // Predicated region
      $region49: #{tpu_custom_call.1} parent=5 // pred_check
        %p328 = pneg %p327
      $region50: #{tpu_custom_call.1} parent=5 // pred_check_branch
        %330 = sbr.rel (%p328) target = $region52
      $region51: #{tpu_custom_call.1} parent=5 // pred_region
        %s331 = ssub.s32 %s17, 2
        // Predicated region
        $region53: #{tpu_custom_call.1} parent=51 // pred_check
          %p332 = pneg %p114
        $region54: #{tpu_custom_call.1} parent=51 // pred_check_branch
          %334 = sbr.rel (%p332) target = $region56
        $region55: #{tpu_custom_call.1} parent=51 // pred_region
          %s335 = sand.u32 %s99, 1
          %s336 = scalar_lea.sflag [#allocation6], %s335
          %s337 = sand.u32 %s99, 1
          %s338 = smul.addr %s337, 4
          %s339 = scalar_lea.vmem [#allocation9], %s338
          %340 = dma.done %s336, 64
        $region56: #{tpu_custom_call.1} parent=51 // pred_fallthru
          _
      $region52: #{tpu_custom_call.1} parent=5 // pred_fallthru
        _
    $region6: #{tpu_custom_call.1} parent=1 // loop_footer
      %s21 = sadd.s32 1, %s17
    $region7: #{tpu_custom_call.1} parent=1 // loop_footer_branch
      %16 = sbr.rel target = $region3
    $region8: #{tpu_custom_call.1} parent=1 // loop_exit
      _
    %341 = vsyncpa [#allocation5], 1
    %s342 = scalar_lea.sflag [#allocation5], 1
    %343 = vsyncpa %s342, 1
    %344 = vsyncpa [#allocation8], 1
    %s345 = scalar_lea.sflag [#allocation8], 1
    %346 = vsyncpa %s345, 1
    %347 = vsyncpa [#allocation6], 1
    %s348 = scalar_lea.sflag [#allocation6], 1
    %349 = vsyncpa %s348, 1

</llo_original>
